<compile_context>
chip_gen: v7x
topology: tpu7x:2x2x1
jax: 0.10.0
libtpu: 0.0.40
codegen_flags: <defaults>
</compile_context>

<pallas_src>
import functools

import jax
import jax.numpy as jnp
from jax import lax
from jax.experimental import pallas as pl
from jax.experimental.pallas import tpu as pltpu


def _sepconv1d_kernel(x_ref, wd_ref, bd_ref, wp_ref, bp_ref, o_ref, *scratch,
                      K, S, P, L, L_out, use_mxu, tap_dtype, mm_dtype):
    """One batch tile per grid step.

    stride == 1:
      x_ref : (B_TILE, C_in, L)        unpadded input tile
      scratch[0] (VMEM): (B_TILE, C_in, L + 2P) padded copy built in-kernel
    stride > 1:
      x_ref : (B_TILE, S, C_in, Lq)    phase-decomposed, padding baked in by wrapper
    wd_ref: (C_in, K)   depthwise weights     bd_ref: (C_in, 1)
    wp_ref: (C_out, C_in) pointwise weights   bp_ref: (C_out, 1)
    o_ref : (B_TILE, C_out, L_out)
    """
    B = o_ref.shape[0]
    C_in = wd_ref.shape[0]
    C_out = wp_ref.shape[0]

    if S == 1:
        # Build the padded slab in VMEM (cheap: VMEM bandwidth, not HBM).
        xp_ref = scratch[0]
        if P > 0:
            halo = jnp.zeros((B, C_in, P), xp_ref.dtype)
            xp_ref[:, :, pl.ds(0, P)] = halo
            xp_ref[:, :, pl.ds(P + L, P)] = halo
        xp_ref[:, :, pl.ds(P, L)] = x_ref[...]

        def tap(k):  # unit-stride lane window for tap k
            return xp_ref[:, :, pl.ds(k, L_out)]
    else:
        # Phase-decomposed input: padded index j*S + k == phase (k % S), offset
        # (j + k // S) -> every tap is a unit-stride lane window (no strided vld).
        def tap(k):
            return x_ref[:, k % S, :, pl.ds(k // S, L_out)]

    # --- depthwise conv: per-tap shifted multiply-accumulate on the VPU ---
    # Tap multiplies run in the activation dtype (bf16 on v6e/v7x when inputs are
    # bf16); the running accumulator stays f32.
    wd = wd_ref[...].astype(tap_dtype)                      # (C_in, K)
    wd_taps = [wd[:, k:k + 1][None, :, :] for k in range(K)]  # hoisted (1, C_in, 1)

    acc = jnp.zeros((B, C_in, L_out), jnp.float32)
    for k in range(K):                                      # K static -> unrolled
        acc = acc + tap(k) * wd_taps[k]                     # promoted to f32 on add
    acc = acc + bd_ref[...].astype(jnp.float32)[None, :, :]

    bp = bp_ref[...].astype(jnp.float32)                    # (C_out, 1)

    # --- pointwise 1x1 conv (channel mixing) ---
    if use_mxu:
        # Large channel counts: MXU matmuls, bf16 operands when inputs are bf16,
        # f32 accumulation via preferred_element_type.
        wp = wp_ref[...].astype(mm_dtype)                   # (C_out, C_in)
        for b in range(B):                                  # B static & small
            ob = jnp.dot(wp, acc[b].astype(mm_dtype),
                         preferred_element_type=jnp.float32)
            o_ref[b, :, :] = (ob + bp).astype(o_ref.dtype)
    else:
        # Tiny channel counts: a handful of VPU broadcast-MACs beats an
        # under-filled 128/256-wide systolic array.
        wp = wp_ref[...].astype(jnp.float32)                # (C_out, C_in)
        wp_cols = [wp[:, c:c + 1][None, :, :] for c in range(C_in)]  # (1, C_out, 1)
        out = jnp.zeros((B, C_out, L_out), jnp.float32)
        for c in range(C_in):
            out = out + wp_cols[c] * acc[:, c, :][:, None, :]
        o_ref[...] = (out + bp[None, :, :]).astype(o_ref.dtype)


def separable_conv1d(x, wd, bd, wp, bp, *, stride, padding):
    """x: (N, C_in, L) -> (N, C_out, L_out); matches
    nn.Conv1d(C_in, C_in, K, stride, padding, groups=C_in) then nn.Conv1d(C_in, C_out, 1)."""
    N, C_in, L = x.shape
    C_out = wp.shape[0]
    K = wd.shape[1]
    S, P = int(stride), int(padding)
    L_pad = L + 2 * P
    L_out = (L_pad - K) // S + 1
    assert L_out > 0, "output length must be positive"

    itemsize = jnp.dtype(x.dtype).itemsize
    is_bf16 = x.dtype == jnp.bfloat16
    tap_dtype = jnp.bfloat16 if is_bf16 else jnp.float32
    mm_dtype = jnp.bfloat16 if is_bf16 else jnp.float32
    # Tiny channel counts -> VPU pointwise; otherwise MXU (pad C to 128/256 in
    # real models for full MXU granularity).
    use_mxu = C_in > 32

    Lq = (L_pad + S - 1) // S  # per-phase length (stride>1 path)

    # --- pick B_TILE against a per-step VMEM budget (double-buffered blocks) ---
    budget = 10 * 1024 * 1024  # stays well inside v7x's 32 MiB default scoped VMEM
    if S == 1:
        per_b = (2 * C_in * L + C_in * L_pad + 2 * C_out * L_out) * itemsize
    else:
        per_b = (2 * S * C_in * Lq + 2 * C_out * L_out) * itemsize
    per_b += (C_in + C_out) * L_out * 4  # f32 in-kernel intermediates
    B_TILE = int(max(1, min(N, budget // max(per_b, 1), 8)))
    while N % B_TILE:          # keep full tiles (no ragged last block)
        B_TILE -= 1

    # --- arrange the input so every in-kernel tap read is unit-stride on lanes ---
    if S == 1:
        x_in = x  # no HBM-level padding copy; halo handled inside the kernel
        x_spec = pl.BlockSpec((B_TILE, C_in, L), lambda n: (n, 0, 0))
        scratch_shapes = [pltpu.VMEM((B_TILE, C_in, L_pad), x.dtype)]
    else:
        # Phase-decompose (one extra pass over x, only when strided):
        # x_ph[n, s, c, m] = x_padded[n, c, m*S + s]
        extra = Lq * S - L_pad
        x_pp = jnp.pad(x, ((0, 0), (0, 0), (P, P + extra)))
        x_in = x_pp.reshape(N, C_in, Lq, S).transpose(0, 3, 1, 2)  # (N, S, C_in, Lq)
        x_spec = pl.BlockSpec((B_TILE, S, C_in, Lq), lambda n: (n, 0, 0, 0))
        scratch_shapes = []

    kernel = functools.partial(
        _sepconv1d_kernel, K=K, S=S, P=P, L=L, L_out=L_out,
        use_mxu=use_mxu, tap_dtype=tap_dtype, mm_dtype=mm_dtype)

    grid = (N // B_TILE,)
    return pl.pallas_call(
        kernel,
        out_shape=jax.ShapeDtypeStruct((N, C_out, L_out), x.dtype),
        grid=grid,
        in_specs=[
            x_spec,
            pl.BlockSpec((C_in, K), lambda n: (0, 0)),
            pl.BlockSpec((C_in, 1), lambda n: (0, 0)),
            pl.BlockSpec((C_out, C_in), lambda n: (0, 0)),
            pl.BlockSpec((C_out, 1), lambda n: (0, 0)),
        ],
        out_specs=pl.BlockSpec((B_TILE, C_out, L_out), lambda n: (n, 0, 0)),
        scratch_shapes=scratch_shapes,
        compiler_params=pltpu.CompilerParams(
            dimension_semantics=("parallel",),      # shard batch tiles across TCs (v7x)
            vmem_limit_bytes=32 * 1024 * 1024),
    )(x_in, wd, bd, wp, bp)


def _reference(x, wd, bd, wp, bp, *, stride, padding):
    """Pure-JAX reference matching torch Conv1d semantics (NCW / OIW)."""
    C_in = x.shape[1]
    C_out = wp.shape[0]
    K = wd.shape[1]
    dw = lax.conv_general_dilated(
        x, wd.reshape(C_in, 1, K), window_strides=(stride,),
        padding=[(padding, padding)], feature_group_count=C_in,
        dimension_numbers=("NCH", "OIH", "NCH"))
    dw = dw + bd.reshape(1, C_in, 1)
    pw = lax.conv_general_dilated(
        dw, wp.reshape(C_out, C_in, 1), window_strides=(1,),
        padding=[(0, 0)], dimension_numbers=("NCH", "OIH", "NCH"))
    return pw + bp.reshape(1, C_out, 1)


if __name__ == "__main__":
    key = jax.random.PRNGKey(0)
    kx, kwd, kbd, kwp, kbp, kx2 = jax.random.split(key, 6)

    # ---- case 1: stride=1, padding=1 (the usual Xception-style config) ----
    N, C_in, C_out, L = 2, 4, 8, 16
    K, STRIDE, PADDING = 3, 1, 1

    x = jax.random.normal(kx, (N, C_in, L), dtype=jnp.float32)
    # depthwise: weight (C_in, 1, K) -> stored (C_in, K); bias (C_in,) -> (C_in, 1)
    wd = jax.random.normal(kwd, (C_in, K), dtype=jnp.float32) * 0.3
    bd = jax.random.normal(kbd, (C_in, 1), dtype=jnp.float32) * 0.1
    # pointwise: weight (C_out, C_in, 1) -> stored (C_out, C_in); bias (C_out,) -> (C_out, 1)
    wp = jax.random.normal(kwp, (C_out, C_in), dtype=jnp.float32) * 0.3
    bp = jax.random.normal(kbp, (C_out, 1), dtype=jnp.float32) * 0.1

    out = jax.block_until_ready(
        separable_conv1d(x, wd, bd, wp, bp, stride=STRIDE, padding=PADDING))
    ref = _reference(x, wd, bd, wp, bp, stride=STRIDE, padding=PADDING)
    assert out.shape == ref.shape, (out.shape, ref.shape)
    assert jnp.allclose(out, ref, atol=1e-5, rtol=1e-5), "mismatch (stride=1)"

    # ---- case 2: stride=2 exercises the phase-decomposed (unit-stride) path ----
    N2, L2, S2, P2 = 3, 17, 2, 1
    x2 = jax.random.normal(kx2, (N2, C_in, L2), dtype=jnp.float32)
    out2 = jax.block_until_ready(
        separable_conv1d(x2, wd, bd, wp, bp, stride=S2, padding=P2))
    ref2 = _reference(x2, wd, bd, wp, bp, stride=S2, padding=P2)
    assert out2.shape == ref2.shape, (out2.shape, ref2.shape)
    assert jnp.allclose(out2, ref2, atol=1e-5, rtol=1e-5), "mismatch (stride=2)"

    print("KERNEL_OK")
</pallas_src>

<mosaic_0001>
module attributes {stable_mosaic.version = 11 : i64} {
  func.func @_sepconv1d_kernel(%arg0: i32, %arg1: memref<2x4x16xf32, #tpu.memory_space<vmem>>, %arg2: memref<4x3xf32, #tpu.memory_space<vmem>>, %arg3: memref<4x1xf32, #tpu.memory_space<vmem>>, %arg4: memref<8x4xf32, #tpu.memory_space<vmem>>, %arg5: memref<8x1xf32, #tpu.memory_space<vmem>>, %arg6: memref<2x8x16xf32, #tpu.memory_space<vmem>>, %arg7: memref<2x4x18xf32, #tpu.memory_space<vmem>>) attributes {dimension_semantics = [#tpu.dimension_semantics<parallel>], iteration_bounds = array<i64: 1>, scalar_prefetch = 0 : i64, scratch_operands = 1 : i64, tpu.core_type = #tpu.core_type<tc>, window_params = [{transform_indices = @transform_0, window_bounds = array<i64: 2, 4, 16>}, {pipeline_mode = #tpu.pipeline_mode<synchronous>, transform_indices = @transform_1, window_bounds = array<i64: 4, 3>}, {pipeline_mode = #tpu.pipeline_mode<synchronous>, transform_indices = @transform_2, window_bounds = array<i64: 4, 1>}, {pipeline_mode = #tpu.pipeline_mode<synchronous>, transform_indices = @transform_3, window_bounds = array<i64: 8, 4>}, {pipeline_mode = #tpu.pipeline_mode<synchronous>, transform_indices = @transform_4, window_bounds = array<i64: 8, 1>}, {transform_indices = @transform_5, window_bounds = array<i64: 2, 8, 16>}]} {
    %cst = arith.constant 0.000000e+00 : f32
    %0 = vector.broadcast %cst : f32 to vector<2x4x1xf32>
    %c0 = arith.constant 0 : index
    %c0_0 = arith.constant 0 : index
    %c0_1 = arith.constant 0 : index
    %1 = vector.load %arg7[%c0, %c0_0, %c0_1] : memref<2x4x18xf32, #tpu.memory_space<vmem>>, vector<2x4x1xf32>
    tpu.vector_store %arg7[%c0, %c0_0, %c0_1], %0 {strides = array<i32>} : memref<2x4x18xf32, #tpu.memory_space<vmem>>, vector<2x4x1xf32>,
    %c0_2 = arith.constant 0 : index
    %c0_3 = arith.constant 0 : index
    %c17 = arith.constant 17 : index
    %2 = vector.load %arg7[%c0_2, %c0_3, %c17] : memref<2x4x18xf32, #tpu.memory_space<vmem>>, vector<2x4x1xf32>
    tpu.vector_store %arg7[%c0_2, %c0_3, %c17], %0 {strides = array<i32>} : memref<2x4x18xf32, #tpu.memory_space<vmem>>, vector<2x4x1xf32>,
    %c0_4 = arith.constant 0 : index
    %c0_5 = arith.constant 0 : index
    %c0_6 = arith.constant 0 : index
    %3 = vector.load %arg1[%c0_4, %c0_5, %c0_6] : memref<2x4x16xf32, #tpu.memory_space<vmem>>, vector<2x4x16xf32>
    %c0_7 = arith.constant 0 : index
    %c0_8 = arith.constant 0 : index
    %c1 = arith.constant 1 : index
    %4 = vector.load %arg7[%c0_7, %c0_8, %c1] : memref<2x4x18xf32, #tpu.memory_space<vmem>>, vector<2x4x16xf32>
    tpu.vector_store %arg7[%c0_7, %c0_8, %c1], %3 {strides = array<i32>} : memref<2x4x18xf32, #tpu.memory_space<vmem>>, vector<2x4x16xf32>,
    %c0_9 = arith.constant 0 : index
    %c0_10 = arith.constant 0 : index
    %5 = vector.load %arg2[%c0_9, %c0_10] : memref<4x3xf32, #tpu.memory_space<vmem>>, vector<4x3xf32>
    %6 = vector.extract_strided_slice %5 {offsets = [0, 0], sizes = [4, 1], strides = [1, 1]} : vector<4x3xf32> to vector<4x1xf32>
    %7 = vector.shape_cast %6 : vector<4x1xf32> to vector<1x4x1xf32>
    %8 = vector.extract_strided_slice %5 {offsets = [0, 1], sizes = [4, 1], strides = [1, 1]} : vector<4x3xf32> to vector<4x1xf32>
    %9 = vector.shape_cast %8 : vector<4x1xf32> to vector<1x4x1xf32>
    %10 = vector.extract_strided_slice %5 {offsets = [0, 2], sizes = [4, 1], strides = [1, 1]} : vector<4x3xf32> to vector<4x1xf32>
    %11 = vector.shape_cast %10 : vector<4x1xf32> to vector<1x4x1xf32>
    %cst_11 = arith.constant 0.000000e+00 : f32
    %12 = vector.broadcast %cst_11 : f32 to vector<2x4x16xf32>
    %c0_12 = arith.constant 0 : index
    %c0_13 = arith.constant 0 : index
    %c0_14 = arith.constant 0 : index
    %13 = vector.load %arg7[%c0_12, %c0_13, %c0_14] : memref<2x4x18xf32, #tpu.memory_space<vmem>>, vector<2x4x16xf32>
    %14 = vector.broadcast %7 : vector<1x4x1xf32> to vector<2x4x16xf32>
    %15 = arith.mulf %13, %14 : vector<2x4x16xf32>
    %16 = arith.addf %12, %15 : vector<2x4x16xf32>
    %c0_15 = arith.constant 0 : index
    %c0_16 = arith.constant 0 : index
    %c1_17 = arith.constant 1 : index
    %17 = vector.load %arg7[%c0_15, %c0_16, %c1_17] : memref<2x4x18xf32, #tpu.memory_space<vmem>>, vector<2x4x16xf32>
    %18 = vector.broadcast %9 : vector<1x4x1xf32> to vector<2x4x16xf32>
    %19 = arith.mulf %17, %18 : vector<2x4x16xf32>
    %20 = arith.addf %16, %19 : vector<2x4x16xf32>
    %c0_18 = arith.constant 0 : index
    %c0_19 = arith.constant 0 : index
    %c2 = arith.constant 2 : index
    %21 = vector.load %arg7[%c0_18, %c0_19, %c2] : memref<2x4x18xf32, #tpu.memory_space<vmem>>, vector<2x4x16xf32>
    %22 = vector.broadcast %11 : vector<1x4x1xf32> to vector<2x4x16xf32>
    %23 = arith.mulf %21, %22 : vector<2x4x16xf32>
    %24 = arith.addf %20, %23 : vector<2x4x16xf32>
    %c0_20 = arith.constant 0 : index
    %c0_21 = arith.constant 0 : index
    %25 = vector.load %arg3[%c0_20, %c0_21] : memref<4x1xf32, #tpu.memory_space<vmem>>, vector<4x1xf32>
    %26 = vector.shape_cast %25 : vector<4x1xf32> to vector<1x4x1xf32>
    %27 = vector.broadcast %26 : vector<1x4x1xf32> to vector<2x4x16xf32>
    %28 = arith.addf %24, %27 : vector<2x4x16xf32>
    %c0_22 = arith.constant 0 : index
    %c0_23 = arith.constant 0 : index
    %29 = vector.load %arg5[%c0_22, %c0_23] : memref<8x1xf32, #tpu.memory_space<vmem>>, vector<8x1xf32>
    %c0_24 = arith.constant 0 : index
    %c0_25 = arith.constant 0 : index
    %30 = vector.load %arg4[%c0_24, %c0_25] : memref<8x4xf32, #tpu.memory_space<vmem>>, vector<8x4xf32>
    %31 = vector.extract_strided_slice %30 {offsets = [0, 0], sizes = [8, 1], strides = [1, 1]} : vector<8x4xf32> to vector<8x1xf32>
    %32 = vector.shape_cast %31 : vector<8x1xf32> to vector<1x8x1xf32>
    %33 = vector.extract_strided_slice %30 {offsets = [0, 1], sizes = [8, 1], strides = [1, 1]} : vector<8x4xf32> to vector<8x1xf32>
    %34 = vector.shape_cast %33 : vector<8x1xf32> to vector<1x8x1xf32>
    %35 = vector.extract_strided_slice %30 {offsets = [0, 2], sizes = [8, 1], strides = [1, 1]} : vector<8x4xf32> to vector<8x1xf32>
    %36 = vector.shape_cast %35 : vector<8x1xf32> to vector<1x8x1xf32>
    %37 = vector.extract_strided_slice %30 {offsets = [0, 3], sizes = [8, 1], strides = [1, 1]} : vector<8x4xf32> to vector<8x1xf32>
    %38 = vector.shape_cast %37 : vector<8x1xf32> to vector<1x8x1xf32>
    %cst_26 = arith.constant 0.000000e+00 : f32
    %39 = vector.broadcast %cst_26 : f32 to vector<2x8x16xf32>
    %40 = vector.extract_strided_slice %28 {offsets = [0, 0, 0], sizes = [2, 1, 16], strides = [1, 1, 1]} : vector<2x4x16xf32> to vector<2x1x16xf32>
    %41 = vector.shape_cast %40 : vector<2x1x16xf32> to vector<2x16xf32>
    %42 = vector.shape_cast %41 : vector<2x16xf32> to vector<2x1x16xf32>
    %43 = vector.broadcast %32 : vector<1x8x1xf32> to vector<2x8x16xf32>
    %44 = vector.broadcast %42 : vector<2x1x16xf32> to vector<2x8x16xf32>
    %45 = arith.mulf %43, %44 : vector<2x8x16xf32>
    %46 = arith.addf %39, %45 : vector<2x8x16xf32>
    %47 = vector.extract_strided_slice %28 {offsets = [0, 1, 0], sizes = [2, 1, 16], strides = [1, 1, 1]} : vector<2x4x16xf32> to vector<2x1x16xf32>
    %48 = vector.shape_cast %47 : vector<2x1x16xf32> to vector<2x16xf32>
    %49 = vector.shape_cast %48 : vector<2x16xf32> to vector<2x1x16xf32>
    %50 = vector.broadcast %34 : vector<1x8x1xf32> to vector<2x8x16xf32>
    %51 = vector.broadcast %49 : vector<2x1x16xf32> to vector<2x8x16xf32>
    %52 = arith.mulf %50, %51 : vector<2x8x16xf32>
    %53 = arith.addf %46, %52 : vector<2x8x16xf32>
    %54 = vector.extract_strided_slice %28 {offsets = [0, 2, 0], sizes = [2, 1, 16], strides = [1, 1, 1]} : vector<2x4x16xf32> to vector<2x1x16xf32>
    %55 = vector.shape_cast %54 : vector<2x1x16xf32> to vector<2x16xf32>
    %56 = vector.shape_cast %55 : vector<2x16xf32> to vector<2x1x16xf32>
    %57 = vector.broadcast %36 : vector<1x8x1xf32> to vector<2x8x16xf32>
    %58 = vector.broadcast %56 : vector<2x1x16xf32> to vector<2x8x16xf32>
    %59 = arith.mulf %57, %58 : vector<2x8x16xf32>
    %60 = arith.addf %53, %59 : vector<2x8x16xf32>
    %61 = vector.extract_strided_slice %28 {offsets = [0, 3, 0], sizes = [2, 1, 16], strides = [1, 1, 1]} : vector<2x4x16xf32> to vector<2x1x16xf32>
    %62 = vector.shape_cast %61 : vector<2x1x16xf32> to vector<2x16xf32>
    %63 = vector.shape_cast %62 : vector<2x16xf32> to vector<2x1x16xf32>
    %64 = vector.broadcast %38 : vector<1x8x1xf32> to vector<2x8x16xf32>
    %65 = vector.broadcast %63 : vector<2x1x16xf32> to vector<2x8x16xf32>
    %66 = arith.mulf %64, %65 : vector<2x8x16xf32>
    %67 = arith.addf %60, %66 : vector<2x8x16xf32>
    %68 = vector.shape_cast %29 : vector<8x1xf32> to vector<1x8x1xf32>
    %69 = vector.broadcast %68 : vector<1x8x1xf32> to vector<2x8x16xf32>
    %70 = arith.addf %67, %69 : vector<2x8x16xf32>
    %c0_27 = arith.constant 0 : index
    %c0_28 = arith.constant 0 : index
    %c0_29 = arith.constant 0 : index
    %71 = vector.load %arg6[%c0_27, %c0_28, %c0_29] : memref<2x8x16xf32, #tpu.memory_space<vmem>>, vector<2x8x16xf32>
    tpu.vector_store %arg6[%c0_27, %c0_28, %c0_29], %70 {strides = array<i32>} : memref<2x8x16xf32, #tpu.memory_space<vmem>>, vector<2x8x16xf32>,
    return
  }
  func.func @transform_0(%arg0: i32) -> (i32, i32, i32) {
    %c0_i32 = arith.constant 0 : i32
    %c0_i32_0 = arith.constant 0 : i32
    %c0_i32_1 = arith.constant 0 : i32
    return %arg0, %c0_i32, %c0_i32_0 : i32, i32, i32
  }
  func.func @transform_1(%arg0: i32) -> (i32, i32) {
    %c0_i32 = arith.constant 0 : i32
    %c0_i32_0 = arith.constant 0 : i32
    %c0_i32_1 = arith.constant 0 : i32
    return %c0_i32, %c0_i32_0 : i32, i32
  }
  func.func @transform_2(%arg0: i32) -> (i32, i32) {
    %c0_i32 = arith.constant 0 : i32
    %c0_i32_0 = arith.constant 0 : i32
    %c0_i32_1 = arith.constant 0 : i32
    return %c0_i32, %c0_i32_0 : i32, i32
  }
  func.func @transform_3(%arg0: i32) -> (i32, i32) {
    %c0_i32 = arith.constant 0 : i32
    %c0_i32_0 = arith.constant 0 : i32
    %c0_i32_1 = arith.constant 0 : i32
    return %c0_i32, %c0_i32_0 : i32, i32
  }
  func.func @transform_4(%arg0: i32) -> (i32, i32) {
    %c0_i32 = arith.constant 0 : i32
    %c0_i32_0 = arith.constant 0 : i32
    %c0_i32_1 = arith.constant 0 : i32
    return %c0_i32, %c0_i32_0 : i32, i32
  }
  func.func @transform_5(%arg0: i32) -> (i32, i32, i32) {
    %c0_i32 = arith.constant 0 : i32
    %c0_i32_0 = arith.constant 0 : i32
    %c0_i32_1 = arith.constant 0 : i32
    return %arg0, %c0_i32, %c0_i32_0 : i32, i32, i32
  }
}

</mosaic_0001>

<llo_original>
// kernel: tpu_custom_call.1
$region0: #{tpu_custom_call.1}
  #allocation0 [shape = 'u32[]', space=smem, size = 0x4, offset = 0x4, fixed_abs, tag = 'smem constant byte address 0x4 - core index']
  #allocation1 [shape = 'u32[144,128]{1,0:T(1,128)}', space=vmem, size = 0x12000, scoped, tag = 'internal scratch']
  #allocation2 [shape = 'f32[2,4,18]{2,1,0:T(4,128)}', space=vmem, size = 0x1000, scoped, tag = 'scratch operand']
  %s0 = inlined_call_operand.vmem [shape: f32[2,4,16], index: 0, kind: input, shape index: {}]
  %s1 = inlined_call_operand.vmem [shape: f32[4,3], index: 1, kind: input, shape index: {}]
  %s2 = inlined_call_operand.vmem [shape: f32[4,1], index: 2, kind: input, shape index: {}]
  %s3 = inlined_call_operand.vmem [shape: f32[8,4], index: 3, kind: input, shape index: {}]
  %s4 = inlined_call_operand.vmem [shape: f32[8,1], index: 4, kind: input, shape index: {}]
  %s5 = inlined_call_operand.hbm [shape: f32[2,8,16], index: 5, kind: output, shape index: {}]
  %s6 = sld [smem:[#allocation0]]
  $region30: #{tpu_custom_call.1} parent=0
    _
  %s8 = ssub.s32 1, %s6
  %s9 = scalar_select 0, %s8, %s6
  $region1: #{tpu_custom_call.1} parent=0
    #allocation3 [shape = 'u8[8192]{0}', space=vmem, size = 0x2000, scoped, tag = 'output window, operand 0, single buffered']
    #allocation4 [shape = 's32[1]{0}', space=sflag, size = 0x4, scoped, tag = 'scoped memory for tpu_custom_call.1']
    %10 = vsyncpa [#allocation4], 0
    // Predicated region
    $region2: #{tpu_custom_call.1} parent=1 // pred_check
      _
    $region3: #{tpu_custom_call.1} parent=1 // pred_check_branch
      %12 = sbr.rel (0) target = $region5
    $region4: #{tpu_custom_call.1} parent=1 // pred_region
      _
    $region5: #{tpu_custom_call.1} parent=1 // pred_fallthru
      _
    // Predicated region
    $region6: #{tpu_custom_call.1} parent=1 // pred_check
      _
    $region7: #{tpu_custom_call.1} parent=1 // pred_check_branch
      %14 = sbr.rel (0) target = $region9
    $region8: #{tpu_custom_call.1} parent=1 // pred_region
      _
    $region9: #{tpu_custom_call.1} parent=1 // pred_fallthru
      _
    // Predicated region
    $region10: #{tpu_custom_call.1} parent=1 // pred_check
      _
    $region11: #{tpu_custom_call.1} parent=1 // pred_check_branch
      %16 = sbr.rel (0) target = $region13
    $region12: #{tpu_custom_call.1} parent=1 // pred_region
      _
    $region13: #{tpu_custom_call.1} parent=1 // pred_fallthru
      _
    // Predicated region
    $region14: #{tpu_custom_call.1} parent=1 // pred_check
      _
    $region15: #{tpu_custom_call.1} parent=1 // pred_check_branch
      %18 = sbr.rel (0) target = $region17
    $region16: #{tpu_custom_call.1} parent=1 // pred_region
      _
    $region17: #{tpu_custom_call.1} parent=1 // pred_fallthru
      _
    // Predicated region
    $region18: #{tpu_custom_call.1} parent=1 // pred_check
      _
    $region19: #{tpu_custom_call.1} parent=1 // pred_check_branch
      %20 = sbr.rel (0) target = $region21
    $region20: #{tpu_custom_call.1} parent=1 // pred_region
      _
    $region21: #{tpu_custom_call.1} parent=1 // pred_fallthru
      _
    %vm21 = vcmask 3072
    %22 = vst.msk [vmem:[#allocation2] sm:$0xf] %vm21, 0.0
    %23 = vst.msk [vmem:[#allocation2 + $0x4] sm:$0xf] %vm21, 0.0
    %vm24 = vcmask 142472
    %25 = vst.msk [vmem:[#allocation2] sm:$0xf] %vm24, 0.0
    %26 = vst.msk [vmem:[#allocation2 + $0x4] sm:$0xf] %vm24, 0.0
    %v27 = vld [vmem:[%s0] sm:$0xf]
    %v28 = vld [vmem:[%s0 + $0x4] sm:$0xf]
    %31 = vrot.lane.b32.xlu0 %v27, 1
    %v32 = vpop.permute.xlu0 %31
    %33 = vrot.lane.b32.xlu0 %v28, 1
    %v34 = vpop.permute.xlu0 %33
    %vm37 = vcmask 134152
    %38 = vst.msk [vmem:[#allocation2] sm:$0xf] %vm37, %v32
    %39 = vst.msk [vmem:[#allocation2 + $0x4] sm:$0xf] %vm37, %v34
    %v40 = vld [vmem:[%s1] sm:$0xf]
    %v41 = vld [vmem:[#allocation2] sm:$0xf]
    %v42 = vld [vmem:[#allocation2 + $0x4] sm:$0xf]
    %44 = vset.pattern.permute.xlu0 0
    %45 = vperm.xlu0 %44, %v40
    %v46 = vpop.permute.xlu0 %45
    %v48 = vmul.f32 %v41, %v46
    %v49 = vmul.f32 %v42, %v46
    %v50 = vadd.f32 %v48, 0.0
    %v51 = vadd.f32 %v49, 0.0
    %52 = vset.pattern.permute.xlu0 1
    %53 = vperm.xlu0 %52, %v40
    %v54 = vpop.permute.xlu0 %53
    %v56 = vmul.f32 %v41, %v54
    %v57 = vmul.f32 %v42, %v54
    %60 = vrot.lane.b32.xlu0 %v56, 127
    %v61 = vpop.permute.xlu0 %60
    %62 = vrot.lane.b32.xlu0 %v57, 127
    %v63 = vpop.permute.xlu0 %62
    %v66 = vadd.f32 %v50, %v61
    %v67 = vadd.f32 %v51, %v63
    %68 = vset.pattern.permute.xlu0 2
    %69 = vperm.xlu0 %68, %v40
    %v70 = vpop.permute.xlu0 %69
    %v72 = vmul.f32 %v41, %v70
    %v73 = vmul.f32 %v42, %v70
    %76 = vrot.lane.b32.xlu0 %v72, 126
    %v77 = vpop.permute.xlu0 %76
    %78 = vrot.lane.b32.xlu0 %v73, 126
    %v79 = vpop.permute.xlu0 %78
    %v82 = vadd.f32 %v66, %v77
    %v83 = vadd.f32 %v67, %v79
    %v84 = vld [vmem:[%s2] sm:$0xf]
    %86 = vset.pattern.permute.xlu0 0
    %87 = vperm.xlu0 %86, %v84
    %v88 = vpop.permute.xlu0 %87
    %v90 = vadd.f32 %v82, %v88
    %v91 = vadd.f32 %v83, %v88
    %v92 = vld [vmem:[%s4] sm:$0xff]
    %v93 = vld [vmem:[%s3] sm:$0xff]
    %95 = vset.pattern.permute.xlu0 0
    %96 = vperm.xlu0 %95, %v93
    %v97 = vpop.permute.xlu0 %96
    %v99 = vlaneseq
    %v100 = vshrl.u32 %v99, 7
    %v101 = vsub.s32 0, %v100
    %v102 = vrot.slane %v90, %v101
    %v103 = vlaneseq
    %v104 = vshrl.u32 %v103, 7
    %v105 = vsub.s32 0, %v104
    %v106 = vrot.slane %v91, %v105
    %v107 = vmul.f32 %v97, %v102
    %v108 = vmul.f32 %v97, %v106
    %v109 = vadd.f32 %v107, 0.0
    %v110 = vadd.f32 %v108, 0.0
    %111 = vset.pattern.permute.xlu0 1
    %112 = vperm.xlu0 %111, %v93
    %v113 = vpop.permute.xlu0 %112
    %v115 = vlaneseq
    %v116 = vshrl.u32 %v115, 7
    %v117 = vsub.s32 1, %v116
    %v118 = vrot.slane %v90, %v117
    %v119 = vlaneseq
    %v120 = vshrl.u32 %v119, 7
    %v121 = vsub.s32 1, %v120
    %v122 = vrot.slane %v91, %v121
    %v123 = vmul.f32 %v113, %v118
    %v124 = vmul.f32 %v113, %v122
    %v125 = vadd.f32 %v109, %v123
    %v126 = vadd.f32 %v110, %v124
    %127 = vset.pattern.permute.xlu0 2
    %128 = vperm.xlu0 %127, %v93
    %v129 = vpop.permute.xlu0 %128
    %v131 = vlaneseq
    %v132 = vshrl.u32 %v131, 7
    %v133 = vsub.s32 2, %v132
    %v134 = vrot.slane %v90, %v133
    %v135 = vlaneseq
    %v136 = vshrl.u32 %v135, 7
    %v137 = vsub.s32 2, %v136
    %v138 = vrot.slane %v91, %v137
    %v139 = vmul.f32 %v129, %v134
    %v140 = vmul.f32 %v129, %v138
    %v141 = vadd.f32 %v125, %v139
    %v142 = vadd.f32 %v126, %v140
    %143 = vset.pattern.permute.xlu0 3
    %144 = vperm.xlu0 %143, %v93
    %v145 = vpop.permute.xlu0 %144
    %v147 = vlaneseq
    %v148 = vshrl.u32 %v147, 7
    %v149 = vsub.s32 3, %v148
    %v150 = vrot.slane %v90, %v149
    %v151 = vlaneseq
    %v152 = vshrl.u32 %v151, 7
    %v153 = vsub.s32 3, %v152
    %v154 = vrot.slane %v91, %v153
    %v155 = vmul.f32 %v145, %v150
    %v156 = vmul.f32 %v145, %v154
    %v157 = vadd.f32 %v141, %v155
    %v158 = vadd.f32 %v142, %v156
    %160 = vset.pattern.permute.xlu0 0
    %161 = vperm.xlu0 %160, %v92
    %v162 = vpop.permute.xlu0 %161
    %v164 = vadd.f32 %v157, %v162
    %v165 = vadd.f32 %v158, %v162
    %vm166 = vcmask 130048
    %167 = vst.msk [vmem:[#allocation3] sm:$0xff] %vm166, %v164
    %168 = vst.msk [vmem:[#allocation3 + $0x8] sm:$0xff] %vm166, %v165
    // Predicated region
    $region22: #{tpu_custom_call.1} parent=1 // pred_check
      _
    $region23: #{tpu_custom_call.1} parent=1 // pred_check_branch
      %170 = sbr.rel (0) target = $region25
    $region24: #{tpu_custom_call.1} parent=1 // pred_region
      %s172 = ssub.s32 256, 256
      %173 = vsyncadd [#allocation4], %s172
      %s174 = sshll.u32 [#allocation3], 4
      %s175 = int_to_ptr.vmem [resolvable:$true] %s174
      %180 = dma.vmem_to_hbm [thread:$0]  %s175, 256, %s5, [#allocation4], 128, 128, 8
    $region25: #{tpu_custom_call.1} parent=1 // pred_fallthru
      _
    // Predicated region
    $region26: #{tpu_custom_call.1} parent=1 // pred_check
      _
    $region27: #{tpu_custom_call.1} parent=1 // pred_check_branch
      %182 = sbr.rel (0) target = $region29
    $region28: #{tpu_custom_call.1} parent=1 // pred_region
      %183 = dma.done [#allocation4], 256
    $region29: #{tpu_custom_call.1} parent=1 // pred_fallthru
      _
    %184 = vsyncpa [#allocation4], 1

</llo_original>
